<compile_context>
chip_gen: v7x
topology: tpu7x:2x2x1
jax: 0.10.0
libtpu: 0.0.40
codegen_flags: <defaults>
</compile_context>

<pallas_src>
import numpy as np
import jax
import jax.numpy as jnp
from jax import lax
from jax.experimental import pallas as pl
from jax.experimental.pallas import tpu as pltpu


def _round_up(x: int, m: int) -> int:
    return ((x + m - 1) // m) * m


def _vmem_cap_bytes() -> int:
    """~85% of this generation's physical VMEM (v5e/v6e: 128 MiB, v7x: 64 MiB)."""
    try:
        cap = int(pltpu.get_tpu_info().vmem_capacity_bytes)
    except Exception:
        cap = 64 << 20                      # conservative (v7x-sized) fallback
    return max(8 << 20, int(cap * 0.85))


def _auto_ne(e_pad: int) -> int:
    """Split E across two 'parallel' tiles only on dual-TensorCore chips (v7x)."""
    try:
        kind = jax.devices()[0].device_kind.lower().replace(" ", "")
    except Exception:
        return 1
    dual_tc = ("v7" in kind) or ("tpu7" in kind)
    return 2 if (dual_tc and e_pad >= 256) else 1


def _make_fc_kernel(apply_imgnorm: bool, apply_abs: bool):
    """Matmul + deferred first l2norm.  grid = (bi, ej, ki):
    batch tile (parallel), embed tile (parallel), reduction (arbitrary)."""

    def fc_kernel(x_ref, w_ref, b_ref, o_ref, acc_ref, ssq_ref):
        k = pl.program_id(2)

        # ---- init accumulators at the first K step ----
        @pl.when(k == 0)
        def _():
            acc_ref[...] = jnp.zeros_like(acc_ref)
            ssq_ref[...] = jnp.zeros_like(ssq_ref)

        # ---- single load of the x tile; dot dtype already matches w ----
        xv = x_ref[...]
        acc_ref[...] += jnp.dot(xv, w_ref[...],
                                preferred_element_type=jnp.float32)
        xf = xv.astype(jnp.float32)
        ssq_ref[...] += jnp.sum(xf * xf, axis=1, keepdims=True)

        # ---- epilogue at the last K step ----
        @pl.when(k == pl.num_programs(2) - 1)
        def _():
            ssq = ssq_ref[...]
            # Guarded rsqrt: real rows match the torch module, zero-padded rows
            # don't produce NaN.
            inv_norm = jnp.where(ssq > 0.0, lax.rsqrt(ssq), 0.0)
            # Deferred first l2norm: scale BEFORE adding the bias.
            feat = acc_ref[...] * inv_norm + b_ref[...].astype(jnp.float32)

            if apply_imgnorm:
                # Only when this invocation sees the full (padded) E; padded E
                # columns are exactly zero so the norm equals the true-E norm.
                ssq2 = jnp.sum(feat * feat, axis=1, keepdims=True)
                feat = feat * jnp.where(ssq2 > 0.0, lax.rsqrt(ssq2), 0.0)

            if apply_abs:
                feat = jnp.abs(feat)

            o_ref[...] = feat.astype(o_ref.dtype)

    return fc_kernel


def _make_norm_kernel(apply_abs: bool):
    """Row l2norm over the full (padded) E + optional abs (used when ne > 1)."""

    def norm_kernel(f_ref, o_ref):
        feat = f_ref[...]
        ssq = jnp.sum(feat * feat, axis=1, keepdims=True)
        feat = feat * jnp.where(ssq > 0.0, lax.rsqrt(ssq), 0.0)
        if apply_abs:
            feat = jnp.abs(feat)
        o_ref[...] = feat.astype(o_ref.dtype)

    return norm_kernel


def encoder_image_forward(x, w_t, b, *, no_imgnorm=False, use_abs=False,
                          tk=2048, tb=512, ne=None):
    """Head forward.

    x:   [B, D_in] CNN features (VGG19 fc7 output).
    w_t: [D_in, E] fc weight, stored transposed (torch weight is [E, D_in]).
    b:   [E] fc bias.
    ne:  number of E tiles (second 'parallel' grid axis).  None -> 2 on
         dual-TensorCore chips (v7x) when E is large enough, else 1.  With
         ne > 1 the second l2norm (full-E reduction) runs as a tiny extra pass.
    """
    B, D_in = x.shape
    D_w, E = w_t.shape
    assert D_w == D_in, (D_w, D_in)

    # Weight dtype is the compute dtype.  bf16 weights halve HBM traffic (the
    # binding resource); casting x once here removes the per-step VPU cast and
    # halves x DMA too.  NOTE: with bf16 weights the MXU sees bf16-rounded,
    # unnormalized x (torch normalizes in f32 first) -- loosen tolerances.
    compute_dtype = w_t.dtype
    x = x.astype(compute_dtype)
    x_item = jnp.dtype(compute_dtype).itemsize
    w_item = jnp.dtype(w_t.dtype).itemsize

    # ---- tiling geometry ----
    sub = 16 if x_item < 4 else 8            # sublane packing for sub-32-bit x
    if ne is None:
        ne = _auto_ne(_round_up(E, 128))
    ne = max(1, int(ne))
    E_pad = _round_up(E, 128 * ne)           # lane-dense output, even E split
    TE = E_pad // ne

    TB = _round_up(min(tb, _round_up(B, sub)), sub)   # whole batch <= tb => n_b == 1
    TK = _round_up(min(tk, _round_up(D_in, 128)), 128)

    # Shrink tiles until (double-buffered blocks + accumulators) fit the
    # generation-aware VMEM budget.
    cap = _vmem_cap_bytes()

    def k1_bytes(tb_, tk_):
        blocks = (tb_ * tk_ * x_item          # x tile
                  + tk_ * TE * w_item         # weight tile
                  + 128 * TE * 4              # bias tile (padded)
                  + tb_ * TE * 4)             # out tile
        scratch = tb_ * TE * 4 + tb_ * 128 * 4
        return 2 * blocks + scratch

    while k1_bytes(TB, TK) > cap and TK > 256:
        TK = max(256, (TK // 2) // 128 * 128)
    while k1_bytes(TB, TK) > cap and TB > sub:
        new_tb = max(sub, (TB // 2) // sub * sub)
        if new_tb == TB:
            break
        TB = new_tb

    D_pad = _round_up(D_in, TK)
    B_pad = _round_up(B, TB)
    n_b, n_e, n_k = B_pad // TB, ne, D_pad // TK

    # ---- zero padding (zeros affect neither x@W nor ||x||) ----
    x_p = jnp.zeros((B_pad, D_pad), compute_dtype).at[:B, :D_in].set(x)
    w_p = jnp.zeros((D_pad, E_pad), w_t.dtype).at[:D_in, :E].set(w_t)
    b_p = jnp.zeros((1, E_pad), jnp.float32).at[0, :E].set(b.astype(jnp.float32))

    vmem_limit = int(min(max(k1_bytes(TB, TK) + (2 << 20), 8 << 20), cap))

    # Fusion policy: the second l2norm reduces over all of E, so it can only
    # be fused when each invocation sees the full padded E (ne == 1).
    fuse_imgnorm = (n_e == 1) and (not no_imgnorm)
    abs_in_fc = use_abs and (no_imgnorm or n_e == 1)
    need_norm_pass = (not no_imgnorm) and (n_e > 1)

    # Honest bytes for XLA: weight streamed n_b times, x streamed n_e times.
    cost = pl.CostEstimate(
        flops=2 * B_pad * D_pad * E_pad,
        transcendentals=2 * B_pad,
        bytes_accessed=int(n_b * D_pad * E_pad * w_item
                           + n_e * B_pad * D_pad * x_item
                           + E_pad * 4
                           + B_pad * E_pad * 4),
    )

    feat = pl.pallas_call(
        _make_fc_kernel(fuse_imgnorm, abs_in_fc),
        out_shape=jax.ShapeDtypeStruct((B_pad, E_pad), jnp.float32),
        grid_spec=pltpu.PrefetchScalarGridSpec(
            num_scalar_prefetch=0,
            grid=(n_b, n_e, n_k),
            in_specs=[
                pl.BlockSpec((TB, TK), lambda bi, ej, ki: (bi, ki)),   # x
                pl.BlockSpec((TK, TE), lambda bi, ej, ki: (ki, ej)),   # weight
                pl.BlockSpec((1, TE), lambda bi, ej, ki: (0, ej)),     # bias
            ],
            out_specs=pl.BlockSpec((TB, TE), lambda bi, ej, ki: (bi, ej)),
            scratch_shapes=[
                pltpu.VMEM((TB, TE), jnp.float32),   # x@W accumulator
                pltpu.VMEM((TB, 1), jnp.float32),    # row sum-of-squares of x
            ],
        ),
        compiler_params=pltpu.CompilerParams(
            dimension_semantics=("parallel", "parallel", "arbitrary"),
            vmem_limit_bytes=vmem_limit,
        ),
        cost_estimate=cost,
    )(x_p, w_p, b_p)

    if need_norm_pass:
        # Tiny lane-dense pass: second l2norm over full E (+ optional abs).
        norm_vmem = int(min(max(4 * TB * E_pad * 4 + (1 << 20), 4 << 20), cap))
        feat = pl.pallas_call(
            _make_norm_kernel(use_abs),
            out_shape=jax.ShapeDtypeStruct((B_pad, E_pad), jnp.float32),
            grid_spec=pltpu.PrefetchScalarGridSpec(
                num_scalar_prefetch=0,
                grid=(n_b,),
                in_specs=[pl.BlockSpec((TB, E_pad), lambda bi: (bi, 0))],
                out_specs=pl.BlockSpec((TB, E_pad), lambda bi: (bi, 0)),
            ),
            compiler_params=pltpu.CompilerParams(
                dimension_semantics=("parallel",),
                vmem_limit_bytes=norm_vmem,
            ),
        )(feat)

    return feat[:B, :E]


def init_fc_params(key, in_features, embed_size, dtype=jnp.float32):
    """Xavier-uniform init matching init_weights(): r = sqrt(6)/sqrt(in+out), bias=0."""
    r = np.sqrt(6.0) / np.sqrt(in_features + embed_size)
    # torch Linear.weight is [out, in]; store transposed [in, out] for x @ W_t.
    w_t = jax.random.uniform(
        key, (in_features, embed_size), dtype=dtype, minval=-r, maxval=r)
    b = jnp.zeros((embed_size,), dtype=dtype)
    return w_t, b


def encoder_image_ref(x, w_t, b, *, no_imgnorm=False, use_abs=False):
    """Pure-JAX reference mirroring the kernel math (deferred first l2norm,
    compute dtype = weight dtype).  With bf16 weights this is not bit-faithful
    to torch's f32-normalize-then-matmul order."""
    xc = x.astype(w_t.dtype)
    xf = xc.astype(jnp.float32)
    ssq = jnp.sum(xf * xf, axis=1, keepdims=True)
    inv_norm = jnp.where(ssq > 0.0, lax.rsqrt(ssq), 0.0)
    feat = (jnp.dot(xc, w_t, preferred_element_type=jnp.float32) * inv_norm
            + b.astype(jnp.float32)[None, :])
    if not no_imgnorm:
        ssq2 = jnp.sum(feat * feat, axis=1, keepdims=True)
        feat = feat * jnp.where(ssq2 > 0.0, lax.rsqrt(ssq2), 0.0)
    if use_abs:
        feat = jnp.abs(feat)
    return feat


if __name__ == "__main__":
    key = jax.random.PRNGKey(0)
    k_x, k_w = jax.random.split(key)

    # Small synthetic shapes consistent with the head: batch=2, CNN feature
    # dim=1024 (stands in for VGG19's 4096-d fc7 output), embed_size=32
    # (padded to 128 lanes inside the kernel).
    B, D_in, E = 2, 1024, 32

    x = jax.random.normal(k_x, (B, D_in), dtype=jnp.float32)
    w32, b32 = init_fc_params(k_w, D_in, E, dtype=jnp.float32)

    # 1) f32 weights, fused single-kernel path (n_b == 1, default big TK).
    out32 = jax.block_until_ready(
        encoder_image_forward(x, w32, b32, no_imgnorm=False, use_abs=False))
    ref32 = encoder_image_ref(x, w32, b32, no_imgnorm=False, use_abs=False)
    np.testing.assert_allclose(np.asarray(out32), np.asarray(ref32),
                               rtol=2e-3, atol=2e-4)

    # 2) bf16 weights (x cast once in the wrapper): recommended deployment
    #    path -- halves the HBM streaming that bounds this kernel.
    w16 = w32.astype(jnp.bfloat16)
    out16 = jax.block_until_ready(
        encoder_image_forward(x, w16, b32, no_imgnorm=False, use_abs=False))
    ref16 = encoder_image_ref(x, w16, b32, no_imgnorm=False, use_abs=False)
    np.testing.assert_allclose(np.asarray(out16), np.asarray(ref16),
                               rtol=2e-2, atol=2e-3)

    # 3) Explicit E-split (ne=2, v7x megacore layout) + multi-step reduction
    #    (tk=512 -> 2 K steps) + the separate full-E normalization pass.
    out_sp = jax.block_until_ready(
        encoder_image_forward(x, w32, b32, no_imgnorm=False, use_abs=True,
                              tk=512, ne=2))
    ref_sp = encoder_image_ref(x, w32, b32, no_imgnorm=False, use_abs=True)
    np.testing.assert_allclose(np.asarray(out_sp), np.asarray(ref_sp),
                               rtol=2e-3, atol=2e-4)

    # 4) Branch coverage: no_imgnorm=True, use_abs=True (abs fused in kernel 1).
    out_v = jax.block_until_ready(
        encoder_image_forward(x, w32, b32, no_imgnorm=True, use_abs=True))
    ref_v = encoder_image_ref(x, w32, b32, no_imgnorm=True, use_abs=True)
    np.testing.assert_allclose(np.asarray(out_v), np.asarray(ref_v),
                               rtol=2e-3, atol=2e-4)

    print("KERNEL_OK")
</pallas_src>

<mosaic_0001>
module attributes {stable_mosaic.version = 11 : i64} {
  func.func @fc_kernel(%arg0: i32, %arg1: i32, %arg2: i32, %arg3: memref<8x1024xf32, #tpu.memory_space<vmem>>, %arg4: memref<1024x128xf32, #tpu.memory_space<vmem>>, %arg5: memref<1x128xf32, #tpu.memory_space<vmem>>, %arg6: memref<8x128xf32, #tpu.memory_space<vmem>>, %arg7: memref<8x128xf32, #tpu.memory_space<vmem>>, %arg8: memref<8x1xf32, #tpu.memory_space<vmem>>) attributes {dimension_semantics = [#tpu.dimension_semantics<parallel>, #tpu.dimension_semantics<parallel>, #tpu.dimension_semantics<arbitrary>], iteration_bounds = array<i64: 1, 1, 1>, scalar_prefetch = 0 : i64, scratch_operands = 2 : i64, tpu.core_type = #tpu.core_type<tc>, window_params = [{transform_indices = @transform_0, window_bounds = array<i64: 8, 1024>}, {transform_indices = @transform_1, window_bounds = array<i64: 1024, 128>}, {transform_indices = @transform_2, window_bounds = array<i64: 1, 128>}, {transform_indices = @transform_3, window_bounds = array<i64: 8, 128>}]} {
    %c0_i32 = arith.constant 0 : i32
    %0 = arith.cmpi eq, %arg2, %c0_i32 : i32
    %1 = arith.extui %0 : i1 to i32
    %c0_i32_0 = arith.constant 0 : i32
    %2 = arith.cmpi ne, %1, %c0_i32_0 : i32
    scf.if %2 {
      %cst_15 = arith.constant 0.000000e+00 : f32
      %18 = vector.broadcast %cst_15 : f32 to vector<8x128xf32>
      %c0_16 = arith.constant 0 : index
      %c0_17 = arith.constant 0 : index
      %19 = vector.load %arg7[%c0_16, %c0_17] : memref<8x128xf32, #tpu.memory_space<vmem>>, vector<8x128xf32>
      tpu.vector_store %arg7[%c0_16, %c0_17], %18 {strides = array<i32>} : memref<8x128xf32, #tpu.memory_space<vmem>>, vector<8x128xf32>,
      %cst_18 = arith.constant 0.000000e+00 : f32
      %20 = vector.broadcast %cst_18 : f32 to vector<8x1xf32>
      %c0_19 = arith.constant 0 : index
      %c0_20 = arith.constant 0 : index
      %21 = vector.load %arg8[%c0_19, %c0_20] : memref<8x1xf32, #tpu.memory_space<vmem>>, vector<8x1xf32>
      tpu.vector_store %arg8[%c0_19, %c0_20], %20 {strides = array<i32>} : memref<8x1xf32, #tpu.memory_space<vmem>>, vector<8x1xf32>,
    } else {
    }
    %c0 = arith.constant 0 : index
    %c0_1 = arith.constant 0 : index
    %3 = vector.load %arg3[%c0, %c0_1] : memref<8x1024xf32, #tpu.memory_space<vmem>>, vector<8x1024xf32>
    %c0_2 = arith.constant 0 : index
    %c0_3 = arith.constant 0 : index
    %4 = vector.load %arg7[%c0_2, %c0_3] : memref<8x128xf32, #tpu.memory_space<vmem>>, vector<8x128xf32>
    %c0_4 = arith.constant 0 : index
    %c0_5 = arith.constant 0 : index
    %5 = vector.load %arg4[%c0_4, %c0_5] : memref<1024x128xf32, #tpu.memory_space<vmem>>, vector<1024x128xf32>
    %cst = arith.constant dense<0.000000e+00> : vector<8x128xf32>
    %6 = tpu.matmul %3, %5, %cst {dimension_numbers = #tpu.dot_dimension_numbers<[1], [0], [0], [1], [0, 0, 1, 1], [], []>} : vector<8x1024xf32>, vector<1024x128xf32>, vector<8x128xf32> -> vector<8x128xf32>
    %7 = arith.addf %4, %6 : vector<8x128xf32>
    %c0_6 = arith.constant 0 : index
    %c0_7 = arith.constant 0 : index
    %8 = vector.load %arg7[%c0_6, %c0_7] : memref<8x128xf32, #tpu.memory_space<vmem>>, vector<8x128xf32>
    tpu.vector_store %arg7[%c0_6, %c0_7], %7 {strides = array<i32>} : memref<8x128xf32, #tpu.memory_space<vmem>>, vector<8x128xf32>,
    %c0_8 = arith.constant 0 : index
    %c0_9 = arith.constant 0 : index
    %9 = vector.load %arg8[%c0_8, %c0_9] : memref<8x1xf32, #tpu.memory_space<vmem>>, vector<8x1xf32>
    %10 = arith.mulf %3, %3 : vector<8x1024xf32>
    %cst_10 = arith.constant dense<0.000000e+00> : vector<8xf32>
    %11 = vector.multi_reduction <add>, %10, %cst_10 [1] : vector<8x1024xf32> to vector<8xf32>
    %12 = vector.shape_cast %11 : vector<8xf32> to vector<8x1xf32>
    %13 = arith.addf %9, %12 : vector<8x1xf32>
    %c0_11 = arith.constant 0 : index
    %c0_12 = arith.constant 0 : index
    %14 = vector.load %arg8[%c0_11, %c0_12] : memref<8x1xf32, #tpu.memory_space<vmem>>, vector<8x1xf32>
    tpu.vector_store %arg8[%c0_11, %c0_12], %13 {strides = array<i32>} : memref<8x1xf32, #tpu.memory_space<vmem>>, vector<8x1xf32>,
    %c0_i32_13 = arith.constant 0 : i32
    %15 = arith.cmpi eq, %arg2, %c0_i32_13 : i32
    %16 = arith.extui %15 : i1 to i32
    %c0_i32_14 = arith.constant 0 : i32
    %17 = arith.cmpi ne, %16, %c0_i32_14 : i32
    scf.if %17 {
      %c0_15 = arith.constant 0 : index
      %c0_16 = arith.constant 0 : index
      %18 = vector.load %arg8[%c0_15, %c0_16] : memref<8x1xf32, #tpu.memory_space<vmem>>, vector<8x1xf32>
      %cst_17 = arith.constant 0.000000e+00 : f32
      %19 = vector.broadcast %cst_17 : f32 to vector<8x1xf32>
      %20 = arith.cmpf ogt, %18, %19 : vector<8x1xf32>
      %21 = math.rsqrt %18 : vector<8x1xf32>
      %cst_18 = arith.constant 0.000000e+00 : f32
      %22 = vector.broadcast %cst_18 : f32 to vector<8x1xf32>
      %23 = arith.select %20, %21, %22 : vector<8x1xi1>, vector<8x1xf32>
      %c0_19 = arith.constant 0 : index
      %c0_20 = arith.constant 0 : index
      %24 = vector.load %arg7[%c0_19, %c0_20] : memref<8x128xf32, #tpu.memory_space<vmem>>, vector<8x128xf32>
      %25 = vector.broadcast %23 : vector<8x1xf32> to vector<8x128xf32>
      %26 = arith.mulf %24, %25 : vector<8x128xf32>
      %c0_21 = arith.constant 0 : index
      %c0_22 = arith.constant 0 : index
      %27 = vector.load %arg5[%c0_21, %c0_22] : memref<1x128xf32, #tpu.memory_space<vmem>>, vector<1x128xf32>
      %28 = vector.broadcast %27 : vector<1x128xf32> to vector<8x128xf32>
      %29 = arith.addf %26, %28 : vector<8x128xf32>
      %30 = arith.mulf %29, %29 : vector<8x128xf32>
      %cst_23 = arith.constant dense<0.000000e+00> : vector<8xf32>
      %31 = vector.multi_reduction <add>, %30, %cst_23 [1] : vector<8x128xf32> to vector<8xf32>
      %32 = vector.shape_cast %31 : vector<8xf32> to vector<8x1xf32>
      %cst_24 = arith.constant 0.000000e+00 : f32
      %33 = vector.broadcast %cst_24 : f32 to vector<8x1xf32>
      %34 = arith.cmpf ogt, %32, %33 : vector<8x1xf32>
      %35 = math.rsqrt %32 : vector<8x1xf32>
      %cst_25 = arith.constant 0.000000e+00 : f32
      %36 = vector.broadcast %cst_25 : f32 to vector<8x1xf32>
      %37 = arith.select %34, %35, %36 : vector<8x1xi1>, vector<8x1xf32>
      %38 = vector.broadcast %37 : vector<8x1xf32> to vector<8x128xf32>
      %39 = arith.mulf %29, %38 : vector<8x128xf32>
      %c0_26 = arith.constant 0 : index
      %c0_27 = arith.constant 0 : index
      %40 = vector.load %arg6[%c0_26, %c0_27] : memref<8x128xf32, #tpu.memory_space<vmem>>, vector<8x128xf32>
      tpu.vector_store %arg6[%c0_26, %c0_27], %39 {strides = array<i32>} : memref<8x128xf32, #tpu.memory_space<vmem>>, vector<8x128xf32>,
    } else {
    }
    return
  }
  func.func @transform_0(%arg0: i32, %arg1: i32, %arg2: i32) -> (i32, i32) {
    %c0_i32 = arith.constant 0 : i32
    return %arg0, %arg2 : i32, i32
  }
  func.func @transform_1(%arg0: i32, %arg1: i32, %arg2: i32) -> (i32, i32) {
    %c0_i32 = arith.constant 0 : i32
    return %arg2, %arg1 : i32, i32
  }
  func.func @transform_2(%arg0: i32, %arg1: i32, %arg2: i32) -> (i32, i32) {
    %c0_i32 = arith.constant 0 : i32
    %c0_i32_0 = arith.constant 0 : i32
    return %c0_i32, %arg1 : i32, i32
  }
  func.func @transform_3(%arg0: i32, %arg1: i32, %arg2: i32) -> (i32, i32) {
    %c0_i32 = arith.constant 0 : i32
    return %arg0, %arg1 : i32, i32
  }
}

</mosaic_0001>

<llo_original>
// kernel: tpu_custom_call.1
$region0: #{tpu_custom_call.1}
  #allocation0 [shape = 'u32[]', space=smem, size = 0x4, offset = 0x4, fixed_abs, tag = 'smem constant byte address 0x4 - core index']
  #allocation1 [shape = 'u32[144,128]{1,0:T(1,128)}', space=vmem, size = 0x12000, scoped, tag = 'internal scratch']
  #allocation2 [shape = 'f32[8,128]{1,0:T(8,128)}', space=vmem, size = 0x1000, scoped, tag = 'scratch operand']
  #allocation3 [shape = 'f32[8,1]{1,0:T(8,128)}', space=vmem, size = 0x1000, scoped, tag = 'scratch operand']
  %s0 = inlined_call_operand.hbm [shape: f32[8,1024], index: 0, kind: input, shape index: {}]
  %s1 = inlined_call_operand.hbm [shape: f32[1024,128], index: 1, kind: input, shape index: {}]
  %s2 = inlined_call_operand.vmem [shape: f32[1,128], index: 2, kind: input, shape index: {}]
  %s3 = inlined_call_operand.hbm [shape: f32[8,128], index: 3, kind: output, shape index: {}]
  %s4 = sld [smem:[#allocation0]]
  $region38: #{tpu_custom_call.1} parent=0
    _
  %s6 = ssub.s32 1, %s4
  %s7 = scalar_select 0, %s6, %s4
  $region1: #{tpu_custom_call.1} parent=0
    #allocation4 [shape = 'u8[32768]{0}', space=vmem, size = 0x8000, scoped, tag = 'input window, operand 0, single buffered']
    #allocation5 [shape = 's32[1]{0}', space=sflag, size = 0x4, scoped, tag = 'scoped memory for tpu_custom_call.1']
    #allocation6 [shape = 's32[1]{0}', space=sflag, size = 0x4, scoped, tag = 'scoped memory for tpu_custom_call.1']
    #allocation7 [shape = 'u8[524288]{0}', space=vmem, size = 0x80000, scoped, tag = 'input window, operand 1, single buffered']
    #allocation8 [shape = 's32[1]{0}', space=sflag, size = 0x4, scoped, tag = 'scoped memory for tpu_custom_call.1']
    #allocation9 [shape = 'u8[4096]{0}', space=vmem, size = 0x1000, scoped, tag = 'output window, operand 0, single buffered']
    %8 = vsyncpa [#allocation5], 0
    %9 = vsyncpa [#allocation8], 0
    %10 = vsyncpa [#allocation6], 0
    // Predicated region
    $region2: #{tpu_custom_call.1} parent=1 // pred_check
      _
    $region3: #{tpu_custom_call.1} parent=1 // pred_check_branch
      %12 = sbr.rel (0) target = $region5
    $region4: #{tpu_custom_call.1} parent=1 // pred_region
      %s14 = ssub.s32 1024, 1024
      %15 = vsyncadd [#allocation5], %s14
      %s17 = sshll.u32 [#allocation4], 4
      %s18 = int_to_ptr.vmem [resolvable:$true] %s17
      %20 = dma.hbm_to_vmem [thread:$0]  %s0, 1024, %s18, [#allocation5]
    $region5: #{tpu_custom_call.1} parent=1 // pred_fallthru
      _
    // Predicated region
    $region6: #{tpu_custom_call.1} parent=1 // pred_check
      _
    $region7: #{tpu_custom_call.1} parent=1 // pred_check_branch
      %22 = sbr.rel (0) target = $region9
    $region8: #{tpu_custom_call.1} parent=1 // pred_region
      %s24 = ssub.s32 16384, 16384
      %25 = vsyncadd [#allocation8], %s24
      %s26 = sshll.u32 [#allocation7], 4
      %s27 = int_to_ptr.vmem [resolvable:$true] %s26
      %32 = dma.hbm_to_vmem [thread:$0]  %s1, 16384, %s27, [#allocation8], 128, 128, 8
    $region9: #{tpu_custom_call.1} parent=1 // pred_fallthru
      _
    // Predicated region
    $region10: #{tpu_custom_call.1} parent=1 // pred_check
      _
    $region11: #{tpu_custom_call.1} parent=1 // pred_check_branch
      %34 = sbr.rel (0) target = $region13
    $region12: #{tpu_custom_call.1} parent=1 // pred_region
      _
    $region13: #{tpu_custom_call.1} parent=1 // pred_fallthru
      _
    // Predicated region
    $region14: #{tpu_custom_call.1} parent=1 // pred_check
      _
    $region15: #{tpu_custom_call.1} parent=1 // pred_check_branch
      %36 = sbr.rel (0) target = $region17
    $region16: #{tpu_custom_call.1} parent=1 // pred_region
      %37 = dma.done [#allocation5], 1024
    $region17: #{tpu_custom_call.1} parent=1 // pred_fallthru
      _
    // Predicated region
    $region18: #{tpu_custom_call.1} parent=1 // pred_check
      _
    $region19: #{tpu_custom_call.1} parent=1 // pred_check_branch
      %39 = sbr.rel (0) target = $region21
    $region20: #{tpu_custom_call.1} parent=1 // pred_region
      %40 = dma.done [#allocation8], 16384
    $region21: #{tpu_custom_call.1} parent=1 // pred_fallthru
      _
    %p41 = scmp.eq.s32.totalorder 0, 0
    // Predicated region
    $region22: #{tpu_custom_call.1} parent=1 // pred_check
      %p42 = pneg %p41
    $region23: #{tpu_custom_call.1} parent=1 // pred_check_branch
      %44 = sbr.rel (%p42) target = $region25
    $region24: #{tpu_custom_call.1} parent=1 // pred_region
      %45 = vst [vmem:[#allocation2] sm:$0xff] 0.0
      %vm46 = vcmask 7168
      %47 = vst.msk [vmem:[#allocation3] sm:$0xff] %vm46, 0.0
    $region25: #{tpu_custom_call.1} parent=1 // pred_fallthru
      _
    %v48 = vld [vmem:[#allocation4] sm:$0xff]
    %v49 = vld [vmem:[#allocation4 + $0x8] sm:$0xff]
    %v50 = vld [vmem:[#allocation4 + $0x10] sm:$0xff]
    %v51 = vld [vmem:[#allocation4 + $0x18] sm:$0xff]
    %v52 = vld [vmem:[#allocation4 + $0x20] sm:$0xff]
    %v53 = vld [vmem:[#allocation4 + $0x28] sm:$0xff]
    %v54 = vld [vmem:[#allocation4 + $0x30] sm:$0xff]
    %v55 = vld [vmem:[#allocation4 + $0x38] sm:$0xff]
    %v56 = vld [vmem:[#allocation2] sm:$0xff]
    %v57 = vld [vmem:[#allocation7] sm:$0xff]
    %v58 = vld [vmem:[#allocation7 + $0x8] sm:$0xff]
    %v59 = vld [vmem:[#allocation7 + $0x10] sm:$0xff]
    %v60 = vld [vmem:[#allocation7 + $0x18] sm:$0xff]
    %v61 = vld [vmem:[#allocation7 + $0x20] sm:$0xff]
    %v62 = vld [vmem:[#allocation7 + $0x28] sm:$0xff]
    %v63 = vld [vmem:[#allocation7 + $0x30] sm:$0xff]
    %v64 = vld [vmem:[#allocation7 + $0x38] sm:$0xff]
    %v65 = vld [vmem:[#allocation7 + $0x40] sm:$0xff]
    %v66 = vld [vmem:[#allocation7 + $0x48] sm:$0xff]
    %v67 = vld [vmem:[#allocation7 + $0x50] sm:$0xff]
    %v68 = vld [vmem:[#allocation7 + $0x58] sm:$0xff]
    %v69 = vld [vmem:[#allocation7 + $0x60] sm:$0xff]
    %v70 = vld [vmem:[#allocation7 + $0x68] sm:$0xff]
    %v71 = vld [vmem:[#allocation7 + $0x70] sm:$0xff]
    %v72 = vld [vmem:[#allocation7 + $0x78] sm:$0xff]
    %v73 = vld [vmem:[#allocation7 + $0x80] sm:$0xff]
    %v74 = vld [vmem:[#allocation7 + $0x88] sm:$0xff]
    %v75 = vld [vmem:[#allocation7 + $0x90] sm:$0xff]
    %v76 = vld [vmem:[#allocation7 + $0x98] sm:$0xff]
    %v77 = vld [vmem:[#allocation7 + $0xa0] sm:$0xff]
    %v78 = vld [vmem:[#allocation7 + $0xa8] sm:$0xff]
    %v79 = vld [vmem:[#allocation7 + $0xb0] sm:$0xff]
    %v80 = vld [vmem:[#allocation7 + $0xb8] sm:$0xff]
    %v81 = vld [vmem:[#allocation7 + $0xc0] sm:$0xff]
    %v82 = vld [vmem:[#allocation7 + $0xc8] sm:$0xff]
    %v83 = vld [vmem:[#allocation7 + $0xd0] sm:$0xff]
    %v84 = vld [vmem:[#allocation7 + $0xd8] sm:$0xff]
    %v85 = vld [vmem:[#allocation7 + $0xe0] sm:$0xff]
    %v86 = vld [vmem:[#allocation7 + $0xe8] sm:$0xff]
    %v87 = vld [vmem:[#allocation7 + $0xf0] sm:$0xff]
    %v88 = vld [vmem:[#allocation7 + $0xf8] sm:$0xff]
    %v89 = vld [vmem:[#allocation7 + $0x100] sm:$0xff]
    %v90 = vld [vmem:[#allocation7 + $0x108] sm:$0xff]
    %v91 = vld [vmem:[#allocation7 + $0x110] sm:$0xff]
    %v92 = vld [vmem:[#allocation7 + $0x118] sm:$0xff]
    %v93 = vld [vmem:[#allocation7 + $0x120] sm:$0xff]
    %v94 = vld [vmem:[#allocation7 + $0x128] sm:$0xff]
    %v95 = vld [vmem:[#allocation7 + $0x130] sm:$0xff]
    %v96 = vld [vmem:[#allocation7 + $0x138] sm:$0xff]
    %v97 = vld [vmem:[#allocation7 + $0x140] sm:$0xff]
    %v98 = vld [vmem:[#allocation7 + $0x148] sm:$0xff]
    %v99 = vld [vmem:[#allocation7 + $0x150] sm:$0xff]
    %v100 = vld [vmem:[#allocation7 + $0x158] sm:$0xff]
    %v101 = vld [vmem:[#allocation7 + $0x160] sm:$0xff]
    %v102 = vld [vmem:[#allocation7 + $0x168] sm:$0xff]
    %v103 = vld [vmem:[#allocation7 + $0x170] sm:$0xff]
    %v104 = vld [vmem:[#allocation7 + $0x178] sm:$0xff]
    %v105 = vld [vmem:[#allocation7 + $0x180] sm:$0xff]
    %v106 = vld [vmem:[#allocation7 + $0x188] sm:$0xff]
    %v107 = vld [vmem:[#allocation7 + $0x190] sm:$0xff]
    %v108 = vld [vmem:[#allocation7 + $0x198] sm:$0xff]
    %v109 = vld [vmem:[#allocation7 + $0x1a0] sm:$0xff]
    %v110 = vld [vmem:[#allocation7 + $0x1a8] sm:$0xff]
    %v111 = vld [vmem:[#allocation7 + $0x1b0] sm:$0xff]
    %v112 = vld [vmem:[#allocation7 + $0x1b8] sm:$0xff]
    %v113 = vld [vmem:[#allocation7 + $0x1c0] sm:$0xff]
    %v114 = vld [vmem:[#allocation7 + $0x1c8] sm:$0xff]
    %v115 = vld [vmem:[#allocation7 + $0x1d0] sm:$0xff]
    %v116 = vld [vmem:[#allocation7 + $0x1d8] sm:$0xff]
    %v117 = vld [vmem:[#allocation7 + $0x1e0] sm:$0xff]
    %v118 = vld [vmem:[#allocation7 + $0x1e8] sm:$0xff]
    %v119 = vld [vmem:[#allocation7 + $0x1f0] sm:$0xff]
    %v120 = vld [vmem:[#allocation7 + $0x1f8] sm:$0xff]
    %v121 = vld [vmem:[#allocation7 + $0x200] sm:$0xff]
    %v122 = vld [vmem:[#allocation7 + $0x208] sm:$0xff]
    %v123 = vld [vmem:[#allocation7 + $0x210] sm:$0xff]
    %v124 = vld [vmem:[#allocation7 + $0x218] sm:$0xff]
    %v125 = vld [vmem:[#allocation7 + $0x220] sm:$0xff]
    %v126 = vld [vmem:[#allocation7 + $0x228] sm:$0xff]
    %v127 = vld [vmem:[#allocation7 + $0x230] sm:$0xff]
    %v128 = vld [vmem:[#allocation7 + $0x238] sm:$0xff]
    %v129 = vld [vmem:[#allocation7 + $0x240] sm:$0xff]
    %v130 = vld [vmem:[#allocation7 + $0x248] sm:$0xff]
    %v131 = vld [vmem:[#allocation7 + $0x250] sm:$0xff]
    %v132 = vld [vmem:[#allocation7 + $0x258] sm:$0xff]
    %v133 = vld [vmem:[#allocation7 + $0x260] sm:$0xff]
    %v134 = vld [vmem:[#allocation7 + $0x268] sm:$0xff]
    %v135 = vld [vmem:[#allocation7 + $0x270] sm:$0xff]
    %v136 = vld [vmem:[#allocation7 + $0x278] sm:$0xff]
    %v137 = vld [vmem:[#allocation7 + $0x280] sm:$0xff]
    %v138 = vld [vmem:[#allocation7 + $0x288] sm:$0xff]
    %v139 = vld [vmem:[#allocation7 + $0x290] sm:$0xff]
    %v140 = vld [vmem:[#allocation7 + $0x298] sm:$0xff]
    %v141 = vld [vmem:[#allocation7 + $0x2a0] sm:$0xff]
    %v142 = vld [vmem:[#allocation7 + $0x2a8] sm:$0xff]
    %v143 = vld [vmem:[#allocation7 + $0x2b0] sm:$0xff]
    %v144 = vld [vmem:[#allocation7 + $0x2b8] sm:$0xff]
    %v145 = vld [vmem:[#allocation7 + $0x2c0] sm:$0xff]
    %v146 = vld [vmem:[#allocation7 + $0x2c8] sm:$0xff]
    %v147 = vld [vmem:[#allocation7 + $0x2d0] sm:$0xff]
    %v148 = vld [vmem:[#allocation7 + $0x2d8] sm:$0xff]
    %v149 = vld [vmem:[#allocation7 + $0x2e0] sm:$0xff]
    %v150 = vld [vmem:[#allocation7 + $0x2e8] sm:$0xff]
    %v151 = vld [vmem:[#allocation7 + $0x2f0] sm:$0xff]
    %v152 = vld [vmem:[#allocation7 + $0x2f8] sm:$0xff]
    %v153 = vld [vmem:[#allocation7 + $0x300] sm:$0xff]
    %v154 = vld [vmem:[#allocation7 + $0x308] sm:$0xff]
    %v155 = vld [vmem:[#allocation7 + $0x310] sm:$0xff]
    %v156 = vld [vmem:[#allocation7 + $0x318] sm:$0xff]
    %v157 = vld [vmem:[#allocation7 + $0x320] sm:$0xff]
    %v158 = vld [vmem:[#allocation7 + $0x328] sm:$0xff]
    %v159 = vld [vmem:[#allocation7 + $0x330] sm:$0xff]
    %v160 = vld [vmem:[#allocation7 + $0x338] sm:$0xff]
    %v161 = vld [vmem:[#allocation7 + $0x340] sm:$0xff]
    %v162 = vld [vmem:[#allocation7 + $0x348] sm:$0xff]
    %v163 = vld [vmem:[#allocation7 + $0x350] sm:$0xff]
    %v164 = vld [vmem:[#allocation7 + $0x358] sm:$0xff]
    %v165 = vld [vmem:[#allocation7 + $0x360] sm:$0xff]
    %v166 = vld [vmem:[#allocation7 + $0x368] sm:$0xff]
    %v167 = vld [vmem:[#allocation7 + $0x370] sm:$0xff]
    %v168 = vld [vmem:[#allocation7 + $0x378] sm:$0xff]
    %v169 = vld [vmem:[#allocation7 + $0x380] sm:$0xff]
    %v170 = vld [vmem:[#allocation7 + $0x388] sm:$0xff]
    %v171 = vld [vmem:[#allocation7 + $0x390] sm:$0xff]
    %v172 = vld [vmem:[#allocation7 + $0x398] sm:$0xff]
    %v173 = vld [vmem:[#allocation7 + $0x3a0] sm:$0xff]
    %v174 = vld [vmem:[#allocation7 + $0x3a8] sm:$0xff]
    %v175 = vld [vmem:[#allocation7 + $0x3b0] sm:$0xff]
    %v176 = vld [vmem:[#allocation7 + $0x3b8] sm:$0xff]
    %v177 = vld [vmem:[#allocation7 + $0x3c0] sm:$0xff]
    %v178 = vld [vmem:[#allocation7 + $0x3c8] sm:$0xff]
    %v179 = vld [vmem:[#allocation7 + $0x3d0] sm:$0xff]
    %v180 = vld [vmem:[#allocation7 + $0x3d8] sm:$0xff]
    %v181 = vld [vmem:[#allocation7 + $0x3e0] sm:$0xff]
    %v182 = vld [vmem:[#allocation7 + $0x3e8] sm:$0xff]
    %v183 = vld [vmem:[#allocation7 + $0x3f0] sm:$0xff]
    %v184 = vld [vmem:[#allocation7 + $0x3f8] sm:$0xff]
    %185 = vmatprep.subr.mxu0 0.0
    %186 = vmatpush1.msra.mxu0 %v57
    %187 = vmatprep.subr.mxu0 0.0
    %188 = vmatpush1.msra.mxu0 %v58
    %189 = vmatprep.subr.mxu0 0.0
    %190 = vmatpush1.msra.mxu0 %v59
    %191 = vmatprep.subr.mxu0 0.0
    %192 = vmatpush1.msra.mxu0 %v60
    %193 = vmatprep.subr.mxu0 0.0
    %194 = vmatpush1.msra.mxu0 %v61
    %195 = vmatprep.subr.mxu0 0.0
    %196 = vmatpush1.msra.mxu0 %v62
    %197 = vmatprep.subr.mxu0 0.0
    %198 = vmatpush1.msra.mxu0 %v63
    %199 = vmatprep.subr.mxu0 0.0
    %200 = vmatpush1.msra.mxu0 %v64
    %201 = vmatprep.subr.mxu0 0.0
    %202 = vmatpush1.msra.mxu0 %v65
    %203 = vmatprep.subr.mxu0 0.0
    %204 = vmatpush1.msra.mxu0 %v66
    %205 = vmatprep.subr.mxu0 0.0
    %206 = vmatpush1.msra.mxu0 %v67
    %207 = vmatprep.subr.mxu0 0.0
    %208 = vmatpush1.msra.mxu0 %v68
    %209 = vmatprep.subr.mxu0 0.0
    %210 = vmatpush1.msra.mxu0 %v69
    %211 = vmatprep.subr.mxu0 0.0
    %212 = vmatpush1.msra.mxu0 %v70
    %213 = vmatprep.subr.mxu0 0.0
    %214 = vmatpush1.msra.mxu0 %v71
    %215 = vmatprep.subr.mxu0 0.0
    %216 = vmatpush1.msra.mxu0 %v72
    %217 = vmatprep.subr.mxu0 0.0
    %218 = vmatpush1.msra.mxu0 %v73
    %219 = vmatprep.subr.mxu0 0.0
    %220 = vmatpush1.msra.mxu0 %v74
    %221 = vmatprep.subr.mxu0 0.0
    %222 = vmatpush1.msra.mxu0 %v75
    %223 = vmatprep.subr.mxu0 0.0
    %224 = vmatpush1.msra.mxu0 %v76
    %225 = vmatprep.subr.mxu0 0.0
    %226 = vmatpush1.msra.mxu0 %v77
    %227 = vmatprep.subr.mxu0 0.0
    %228 = vmatpush1.msra.mxu0 %v78
    %229 = vmatprep.subr.mxu0 0.0
    %230 = vmatpush1.msra.mxu0 %v79
    %231 = vmatprep.subr.mxu0 0.0
    %232 = vmatpush1.msra.mxu0 %v80
    %233 = vmatprep.subr.mxu0 0.0
    %234 = vmatpush1.msra.mxu0 %v81
    %235 = vmatprep.subr.mxu0 0.0
    %236 = vmatpush1.msra.mxu0 %v82
    %237 = vmatprep.subr.mxu0 0.0
    %238 = vmatpush1.msra.mxu0 %v83
    %239 = vmatprep.subr.mxu0 0.0
    %240 = vmatpush1.msra.mxu0 %v84
    %241 = vmatprep.subr.mxu0 0.0
    %242 = vmatpush1.msra.mxu0 %v85
    %243 = vmatprep.subr.mxu0 0.0
    %244 = vmatpush1.msra.mxu0 %v86
    %245 = vmatprep.subr.mxu0 0.0
    %246 = vmatpush1.msra.mxu0 %v87
    %247 = vmatprep.subr.mxu0 0.0
    %248 = vmatpush1.msra.mxu0 %v88
    %249 = vmatprep.mubr.f32.mxu0 %v49
    %250 = vmatmul.mubr.f32.gmra.mrb[0].mxu0 %v48
    %v251 = vpop.f32.mrb[0].mxu0
    %v252 = vadd.f32 0.0, %v251
    %v253 = vpop.f32.mrb[0].mxu0
    %254 = vdwg.mxu0
    %255 = vmatprep.subr.mxu0 0.0
    %256 = vmatpush1.msra.mxu0 %v89
    %257 = vmatprep.subr.mxu0 0.0
    %258 = vmatpush1.msra.mxu0 %v90
    %259 = vmatprep.subr.mxu0 0.0
    %260 = vmatpush1.msra.mxu0 %v91
    %261 = vmatprep.subr.mxu0 0.0
    %262 = vmatpush1.msra.mxu0 %v92
    %263 = vmatprep.subr.mxu0 0.0
    %264 = vmatpush1.msra.mxu0 %v93
    %265 = vmatprep.subr.mxu0 0.0
    %266 = vmatpush1.msra.mxu0 %v94
    %267 = vmatprep.subr.mxu0 0.0
    %268 = vmatpush1.msra.mxu0 %v95
    %269 = vmatprep.subr.mxu0 0.0
    %270 = vmatpush1.msra.mxu0 %v96
    %271 = vmatprep.subr.mxu0 0.0
    %272 = vmatpush1.msra.mxu0 %v97
    %273 = vmatprep.subr.mxu0 0.0
    %274 = vmatpush1.msra.mxu0 %v98
    %275 = vmatprep.subr.mxu0 0.0
    %276 = vmatpush1.msra.mxu0 %v99
    %277 = vmatprep.subr.mxu0 0.0
    %278 = vmatpush1.msra.mxu0 %v100
    %279 = vmatprep.subr.mxu0 0.0
    %280 = vmatpush1.msra.mxu0 %v101
    %281 = vmatprep.subr.mxu0 0.0
    %282 = vmatpush1.msra.mxu0 %v102
    %283 = vmatprep.subr.mxu0 0.0
    %284 = vmatpush1.msra.mxu0 %v103
    %285 = vmatprep.subr.mxu0 0.0
    %286 = vmatpush1.msra.mxu0 %v104
    %287 = vmatprep.subr.mxu0 0.0
    %288 = vmatpush1.msra.mxu0 %v105
    %289 = vmatprep.subr.mxu0 0.0
    %290 = vmatpush1.msra.mxu0 %v106
    %291 = vmatprep.subr.mxu0 0.0
    %292 = vmatpush1.msra.mxu0 %v107
    %293 = vmatprep.subr.mxu0 0.0
    %294 = vmatpush1.msra.mxu0 %v108
    %295 = vmatprep.subr.mxu0 0.0
    %296 = vmatpush1.msra.mxu0 %v109
    %297 = vmatprep.subr.mxu0 0.0
    %298 = vmatpush1.msra.mxu0 %v110
    %299 = vmatprep.subr.mxu0 0.0
    %300 = vmatpush1.msra.mxu0 %v111
    %301 = vmatprep.subr.mxu0 0.0
    %302 = vmatpush1.msra.mxu0 %v112
    %303 = vmatprep.subr.mxu0 0.0
    %304 = vmatpush1.msra.mxu0 %v113
    %305 = vmatprep.subr.mxu0 0.0
    %306 = vmatpush1.msra.mxu0 %v114
    %307 = vmatprep.subr.mxu0 0.0
    %308 = vmatpush1.msra.mxu0 %v115
    %309 = vmatprep.subr.mxu0 0.0
    %310 = vmatpush1.msra.mxu0 %v116
    %311 = vmatprep.subr.mxu0 0.0
    %312 = vmatpush1.msra.mxu0 %v117
    %313 = vmatprep.subr.mxu0 0.0
    %314 = vmatpush1.msra.mxu0 %v118
    %315 = vmatprep.subr.mxu0 0.0
    %316 = vmatpush1.msra.mxu0 %v119
    %317 = vmatprep.subr.mxu0 0.0
    %318 = vmatpush1.msra.mxu0 %v120
    %319 = vmatprep.mubr.f32.mxu0 %v51
    %320 = vmatmul.mubr.f32.gmra.mrb[0].mxu0 %v50
    %v321 = vpop.f32.mrb[0].mxu0
    %v322 = vadd.f32 %v252, %v321
    %v323 = vpop.f32.mrb[0].mxu0
    %324 = vdwg.mxu0
    %325 = vmatprep.subr.mxu0 0.0
    %326 = vmatpush1.msra.mxu0 %v121
    %327 = vmatprep.subr.mxu0 0.0
    %328 = vmatpush1.msra.mxu0 %v122
    %329 = vmatprep.subr.mxu0 0.0
    %330 = vmatpush1.msra.mxu0 %v123
    %331 = vmatprep.subr.mxu0 0.0
    %332 = vmatpush1.msra.mxu0 %v124
    %333 = vmatprep.subr.mxu0 0.0
    %334 = vmatpush1.msra.mxu0 %v125
    %335 = vmatprep.subr.mxu0 0.0
    %336 = vmatpush1.msra.mxu0 %v126
    %337 = vmatprep.subr.mxu0 0.0
    %338 = vmatpush1.msra.mxu0 %v127
    %339 = vmatprep.subr.mxu0 0.0
    %340 = vmatpush1.msra.mxu0 %v128
    %341 = vmatprep.subr.mxu0 0.0
    %342 = vmatpush1.msra.mxu0 %v129
    %343 = vmatprep.subr.mxu0 0.0
    %344 = vmatpush1.msra.mxu0 %v130
    %345 = vmatprep.subr.mxu0 0.0
    %346 = vmatpush1.msra.mxu0 %v131
    %347 = vmatprep.subr.mxu0 0.0
    %348 = vmatpush1.msra.mxu0 %v132
    %349 = vmatprep.subr.mxu0 0.0
    %350 = vmatpush1.msra.mxu0 %v133
    %351 = vmatprep.subr.mxu0 0.0
    %352 = vmatpush1.msra.mxu0 %v134
    %353 = vmatprep.subr.mxu0 0.0
    %354 = vmatpush1.msra.mxu0 %v135
    %355 = vmatprep.subr.mxu0 0.0
    %356 = vmatpush1.msra.mxu0 %v136
    %357 = vmatprep.subr.mxu0 0.0
    %358 = vmatpush1.msra.mxu0 %v137
    %359 = vmatprep.subr.mxu0 0.0
    %360 = vmatpush1.msra.mxu0 %v138
    %361 = vmatprep.subr.mxu0 0.0
    %362 = vmatpush1.msra.mxu0 %v139
    %363 = vmatprep.subr.mxu0 0.0
    %364 = vmatpush1.msra.mxu0 %v140
    %365 = vmatprep.subr.mxu0 0.0
    %366 = vmatpush1.msra.mxu0 %v141
    %367 = vmatprep.subr.mxu0 0.0
    %368 = vmatpush1.msra.mxu0 %v142
    %369 = vmatprep.subr.mxu0 0.0
    %370 = vmatpush1.msra.mxu0 %v143
    %371 = vmatprep.subr.mxu0 0.0
    %372 = vmatpush1.msra.mxu0 %v144
    %373 = vmatprep.subr.mxu0 0.0
    %374 = vmatpush1.msra.mxu0 %v145
    %375 = vmatprep.subr.mxu0 0.0
    %376 = vmatpush1.msra.mxu0 %v146
    %377 = vmatprep.subr.mxu0 0.0
    %378 = vmatpush1.msra.mxu0 %v147
    %379 = vmatprep.subr.mxu0 0.0
    %380 = vmatpush1.msra.mxu0 %v148
    %381 = vmatprep.subr.mxu0 0.0
    %382 = vmatpush1.msra.mxu0 %v149
    %383 = vmatprep.subr.mxu0 0.0
    %384 = vmatpush1.msra.mxu0 %v150
    %385 = vmatprep.subr.mxu0 0.0
    %386 = vmatpush1.msra.mxu0 %v151
    %387 = vmatprep.subr.mxu0 0.0
    %388 = vmatpush1.msra.mxu0 %v152
    %389 = vmatprep.mubr.f32.mxu0 %v53
    %390 = vmatmul.mubr.f32.gmra.mrb[0].mxu0 %v52
    %v391 = vpop.f32.mrb[0].mxu0
    %v392 = vadd.f32 %v322, %v391
    %v393 = vpop.f32.mrb[0].mxu0
    %394 = vdwg.mxu0
    %395 = vmatprep.subr.mxu0 0.0
    %396 = vmatpush1.msra.mxu0 %v153
    %397 = vmatprep.subr.mxu0 0.0
    %398 = vmatpush1.msra.mxu0 %v154
    %399 = vmatprep.subr.mxu0 0.0
    %400 = vmatpush1.msra.mxu0 %v155
    %401 = vmatprep.subr.mxu0 0.0
    %402 = vmatpush1.msra.mxu0 %v156
    %403 = vmatprep.subr.mxu0 0.0
    %404 = vmatpush1.msra.mxu0 %v157
    %405 = vmatprep.subr.mxu0 0.0
    %406 = vmatpush1.msra.mxu0 %v158
    %407 = vmatprep.subr.mxu0 0.0
    %408 = vmatpush1.msra.mxu0 %v159
    %409 = vmatprep.subr.mxu0 0.0
    %410 = vmatpush1.msra.mxu0 %v160
    %411 = vmatprep.subr.mxu0 0.0
    %412 = vmatpush1.msra.mxu0 %v161
    %413 = vmatprep.subr.mxu0 0.0
    %414 = vmatpush1.msra.mxu0 %v162
    %415 = vmatprep.subr.mxu0 0.0
    %416 = vmatpush1.msra.mxu0 %v163
    %417 = vmatprep.subr.mxu0 0.0
    %418 = vmatpush1.msra.mxu0 %v164
    %419 = vmatprep.subr.mxu0 0.0
    %420 = vmatpush1.msra.mxu0 %v165
    %421 = vmatprep.subr.mxu0 0.0
    %422 = vmatpush1.msra.mxu0 %v166
    %423 = vmatprep.subr.mxu0 0.0
    %424 = vmatpush1.msra.mxu0 %v167
    %425 = vmatprep.subr.mxu0 0.0
    %426 = vmatpush1.msra.mxu0 %v168
    %427 = vmatprep.subr.mxu0 0.0
    %428 = vmatpush1.msra.mxu0 %v169
    %429 = vmatprep.subr.mxu0 0.0
    %430 = vmatpush1.msra.mxu0 %v170
    %431 = vmatprep.subr.mxu0 0.0
    %432 = vmatpush1.msra.mxu0 %v171
    %433 = vmatprep.subr.mxu0 0.0
    %434 = vmatpush1.msra.mxu0 %v172
    %435 = vmatprep.subr.mxu0 0.0
    %436 = vmatpush1.msra.mxu0 %v173
    %437 = vmatprep.subr.mxu0 0.0
    %438 = vmatpush1.msra.mxu0 %v174
    %439 = vmatprep.subr.mxu0 0.0
    %440 = vmatpush1.msra.mxu0 %v175
    %441 = vmatprep.subr.mxu0 0.0
    %442 = vmatpush1.msra.mxu0 %v176
    %443 = vmatprep.subr.mxu0 0.0
    %444 = vmatpush1.msra.mxu0 %v177
    %445 = vmatprep.subr.mxu0 0.0
    %446 = vmatpush1.msra.mxu0 %v178
    %447 = vmatprep.subr.mxu0 0.0
    %448 = vmatpush1.msra.mxu0 %v179
    %449 = vmatprep.subr.mxu0 0.0
    %450 = vmatpush1.msra.mxu0 %v180
    %451 = vmatprep.subr.mxu0 0.0
    %452 = vmatpush1.msra.mxu0 %v181
    %453 = vmatprep.subr.mxu0 0.0
    %454 = vmatpush1.msra.mxu0 %v182
    %455 = vmatprep.subr.mxu0 0.0
    %456 = vmatpush1.msra.mxu0 %v183
    %457 = vmatprep.subr.mxu0 0.0
    %458 = vmatpush1.msra.mxu0 %v184
    %459 = vmatprep.mubr.f32.mxu0 %v55
    %460 = vmatmul.mubr.f32.gmra.mrb[0].mxu0 %v54
    %v461 = vpop.f32.mrb[0].mxu0
    %v462 = vadd.f32 %v392, %v461
    %v463 = vpop.f32.mrb[0].mxu0
    %464 = vdwg.mxu0
    %v465 = vadd.f32 %v56, %v462
    %466 = vst [vmem:[#allocation2] sm:$0xff] %v465
    %v467 = vld [vmem:[#allocation3] sm:$0xff]
    %v468 = vmul.f32 %v48, %v48
    %v469 = vmul.f32 %v49, %v49
    %v470 = vmul.f32 %v50, %v50
    %v471 = vmul.f32 %v51, %v51
    %v472 = vmul.f32 %v52, %v52
    %v473 = vmul.f32 %v53, %v53
    %v474 = vmul.f32 %v54, %v54
    %v475 = vmul.f32 %v55, %v55
    %v476 = vadd.f32 %v468, %v469
    %v477 = vadd.f32 %v476, %v470
    %v478 = vadd.f32 %v477, %v471
    %v479 = vadd.f32 %v478, %v472
    %v480 = vadd.f32 %v479, %v473
    %v481 = vadd.f32 %v480, %v474
    %v482 = vadd.f32 %v481, %v475
    %483 = vadd.xlane.f32.xlu0 %v482
    %v484 = vpop.xlane.xlu0 %483
    %v485 = vadd.f32 %v467, %v484
    %vm486 = vcmask 7168
    %487 = vst.msk [vmem:[#allocation3] sm:$0xff] %vm486, %v485
    // Predicated region
    $region26: #{tpu_custom_call.1} parent=1 // pred_check
      %p488 = pneg %p41
    $region27: #{tpu_custom_call.1} parent=1 // pred_check_branch
      %490 = sbr.rel (%p488) target = $region29
    $region28: #{tpu_custom_call.1} parent=1 // pred_region
      %v491 = vld [vmem:[#allocation3] sm:$0xff]
      %vm492 = vcmp.gt.f32.partialorder %v491, 0.0
      %v493 = vrsqrt.pop %v491
      %v494 = vsel %vm492, %v493, 0.0
      %v495 = vld [vmem:[#allocation2] sm:$0xff]
      %497 = vset.pattern.permute.xlu0 0
      %498 = vperm.xlu0 %497, %v494
      %v499 = vpop.permute.xlu0 %498
      %v501 = vmul.f32 %v495, %v499
      %v502 = vld [vmem:[%s2] sm:$0x1]
      %v504 = vlaneseq
      %v505 = vshrl.u32 %v504, 7
      %v506 = vsub.s32 0, %v505
      %v507 = vrot.slane %v502, %v506
      %v509 = vadd.f32 %v501, %v507
      %v510 = vmul.f32 %v509, %v509
      %511 = vadd.xlane.f32.xlu0 %v510
      %v512 = vpop.xlane.xlu0 %511
      %vm513 = vcmp.gt.f32.partialorder %v512, 0.0
      %v514 = vrsqrt.pop %v512
      %v515 = vsel %vm513, %v514, 0.0
      %v516 = vmul.f32 %v509, %v515
      %517 = vst [vmem:[#allocation9] sm:$0xff] %v516
    $region29: #{tpu_custom_call.1} parent=1 // pred_fallthru
      _
    // Predicated region
    $region30: #{tpu_custom_call.1} parent=1 // pred_check
      _
    $region31: #{tpu_custom_call.1} parent=1 // pred_check_branch
      %519 = sbr.rel (0) target = $region33
    $region32: #{tpu_custom_call.1} parent=1 // pred_region
      %s521 = ssub.s32 128, 128
      %522 = vsyncadd [#allocation6], %s521
      %s524 = sshll.u32 [#allocation9], 4
      %s525 = int_to_ptr.vmem [resolvable:$true] %s524
      %527 = dma.vmem_to_hbm [thread:$0]  %s525, 128, %s3, [#allocation6]
    $region33: #{tpu_custom_call.1} parent=1 // pred_fallthru
      _
    // Predicated region
    $region34: #{tpu_custom_call.1} parent=1 // pred_check
      _
    $region35: #{tpu_custom_call.1} parent=1 // pred_check_branch
      %529 = sbr.rel (0) target = $region37
    $region36: #{tpu_custom_call.1} parent=1 // pred_region
      %530 = dma.done [#allocation6], 128
    $region37: #{tpu_custom_call.1} parent=1 // pred_fallthru
      _
    %531 = vsyncpa [#allocation5], 1
    %532 = vsyncpa [#allocation8], 1
    %533 = vsyncpa [#allocation6], 1

</llo_original>
